<compile_context>
chip_gen: v6e
topology: v6e:2x2x1
jax: 0.10.0
libtpu: 0.0.40
codegen_flags: <defaults>
</compile_context>

<pallas_src>
import functools

import jax
import jax.numpy as jnp
from jax.experimental import pallas as pl
from jax.experimental.pallas import tpu as pltpu


def _merge_ln_project_kernel(x_ref, ge_ref, go_ref, be_ref, bo_ref,
                             we_ref, wo_ref, out_ref, *, eps):
    """Fused PatchMerging for one (th, 2, tw, 2C) tile.

    x_ref  : (th, 2, tw, 2C) merged-row tile; dim 1 is row parity, channels are
             [col-even C | col-odd C]  (permuted 4C order [x0,x2] / [x1,x3]).
    ge/go/be/bo : (1, 2C) f32 LayerNorm params, pre-permuted & pre-cast.
    we/wo  : (2C, 2C) transposed+permuted weight halves, already in dot dtype.
    out_ref: (th, tw, 2C).
    """
    f32 = jnp.float32
    th, _, tw, c2 = x_ref.shape
    rows = th * tw
    inv_4c = 1.0 / (2.0 * c2)

    # Parity views (leading-dim slices, no data movement) + layout-preserving
    # collapse to (rows, 2C): tw is always a multiple of 8.
    e = x_ref[:, 0].reshape(rows, c2)
    o = x_ref[:, 1].reshape(rows, c2)
    ef = e if e.dtype == f32 else e.astype(f32)
    of = o if o.dtype == f32 else o.astype(f32)

    # Grid-invariant params: already in their final dtypes (no per-step casts).
    ge = ge_ref[...]
    go = go_ref[...]
    be = be_ref[...]
    bo = bo_ref[...]
    we = we_ref[...]
    wo = wo_ref[...]
    dot_dt = we.dtype

    # Single-pass LayerNorm statistics over the (virtual) 4C channel axis.
    s1 = jnp.sum(ef, axis=-1, keepdims=True) + jnp.sum(of, axis=-1, keepdims=True)
    s2 = (jnp.sum(ef * ef, axis=-1, keepdims=True)
          + jnp.sum(of * of, axis=-1, keepdims=True))
    mean = s1 * inv_4c
    var = s2 * inv_4c - mean * mean
    inv = jax.lax.rsqrt(var + eps)

    xe = ((ef - mean) * (inv * ge) + be).astype(dot_dt)
    xo = ((of - mean) * (inv * go) + bo).astype(dot_dt)

    y = (jnp.dot(xe, we, preferred_element_type=f32)
         + jnp.dot(xo, wo, preferred_element_type=f32))
    out_ref[...] = y.reshape(th, tw, out_ref.shape[-1]).astype(out_ref.dtype)


def patch_merging(x, H, W, weight, gamma, beta, *, eps=1e-5):
    """Swin PatchMerging.  x: (B, H*W, C).  weight: (2C, 4C) (PyTorch Linear layout).
    gamma, beta: (4C,).  Returns (B, ceil(H/2)*ceil(W/2), 2C)."""
    B, L, C = x.shape
    assert L == H * W, "input feature has wrong size"

    C2 = 2 * C
    Hp = H + (H % 2)                      # pad to even (matches F.pad in PyTorch)
    Wp_sem = W + (W % 2)                  # semantic padded width
    Wo_real = Wp_sem // 2
    Ho = Hp // 2
    # Extra W padding so Wo is a multiple of 8 -> always take the flat matmul path.
    Wp = ((Wp_sem + 15) // 16) * 16
    Wo = Wp // 2

    x = x.reshape(B, H, W, C)
    if Hp != H or Wp != W:
        x = jnp.pad(x, ((0, 0), (0, Hp - H), (0, Wp - W), (0, 0)))

    BHo = B * Ho
    # Free view: (merged-row, row-parity, out-col, [col-even C | col-odd C]).
    xv = x.reshape(BHo, 2, Wo, C2)

    # Permute LN params / weight rows to the kernel channel order [x0, x2, x1, x3]
    # and pre-cast so the kernel does zero per-step casts.
    perm = jnp.concatenate([jnp.arange(0, C), jnp.arange(2 * C, 3 * C),
                            jnp.arange(C, 2 * C), jnp.arange(3 * C, 4 * C)])
    dot_dt = jnp.bfloat16 if x.dtype == jnp.bfloat16 else jnp.float32
    gamma_p = gamma[perm].astype(jnp.float32)
    beta_p = beta[perm].astype(jnp.float32)
    g_e = gamma_p[:C2].reshape(1, C2)
    g_o = gamma_p[C2:].reshape(1, C2)
    b_e = beta_p[:C2].reshape(1, C2)
    b_o = beta_p[C2:].reshape(1, C2)
    w_t_p = weight.T[perm, :].astype(dot_dt)          # (4C, 2C)
    w_e = w_t_p[:C2]                                   # (2C, 2C)
    w_o = w_t_p[C2:]                                   # (2C, 2C)

    out_dtype = x.dtype
    in_item = jnp.dtype(x.dtype).itemsize
    out_item = jnp.dtype(out_dtype).itemsize
    w_item = jnp.dtype(dot_dt).itemsize

    # ---- per-chip VMEM budget ----
    try:
        vmem_cap = int(pltpu.get_tpu_info().vmem_capacity_bytes)
    except Exception:
        vmem_cap = 64 * 1024 * 1024        # conservative: v7x per-TC VMEM

    w_bytes = 2 * C2 * C2 * w_item
    param_bytes = 4 * C2 * 4
    # Per merged output row: double-buffered DMA bytes + f32 in-kernel working set.
    row_dma = 2 * C2 * in_item + C2 * out_item
    row_work = 6 * C2 * 4
    per_row = 2 * row_dma + row_work

    headroom = 16 * 1024 * 1024
    budget = max(4 * 1024 * 1024, vmem_cap - headroom - 2 * w_bytes - param_bytes)
    max_rows = max(8, budget // per_row)
    target_rows = int(min(1024, max_rows))   # >=512 rows already ~HBM roofline

    if Wo <= target_rows:
        tw = Wo
        th = max(1, min(target_rows // Wo, BHo))
        # Keep >= 4 row tiles when possible (2 pipelined steps per v7x TensorCore).
        th = min(th, max(1, pl.cdiv(BHo, 4)))
    else:
        # Degenerate very-wide case: split the output-column axis instead.
        th = 1
        tw = min(Wo, max(8, (target_rows // 8) * 8))
    n_row = pl.cdiv(BHo, th)
    n_col = pl.cdiv(Wo, tw)

    blk_bytes = th * tw * row_dma
    work_bytes = th * tw * row_work
    est = 2 * blk_bytes + work_bytes + 2 * w_bytes + param_bytes + (1 << 20)
    vmem_limit = int(max(32 * 1024 * 1024,
                         min(vmem_cap - (2 << 20), int(1.5 * est))))

    grid_spec = pltpu.PrefetchScalarGridSpec(
        num_scalar_prefetch=0,
        grid=(n_row, n_col),
        in_specs=[
            pl.BlockSpec((th, 2, tw, C2), lambda i, j: (i, 0, j, 0)),  # merged tile
            pl.BlockSpec((1, C2), lambda i, j: (0, 0)),                # gamma (even rows)
            pl.BlockSpec((1, C2), lambda i, j: (0, 0)),                # gamma (odd rows)
            pl.BlockSpec((1, C2), lambda i, j: (0, 0)),                # beta (even rows)
            pl.BlockSpec((1, C2), lambda i, j: (0, 0)),                # beta (odd rows)
            pl.BlockSpec((C2, C2), lambda i, j: (0, 0)),               # W^T even rows
            pl.BlockSpec((C2, C2), lambda i, j: (0, 0)),               # W^T odd rows
        ],
        out_specs=pl.BlockSpec((th, tw, C2), lambda i, j: (i, j, 0)),
    )

    out = pl.pallas_call(
        functools.partial(_merge_ln_project_kernel, eps=eps),
        out_shape=jax.ShapeDtypeStruct((BHo, Wo, C2), out_dtype),
        grid_spec=grid_spec,
        compiler_params=pltpu.CompilerParams(
            dimension_semantics=("parallel", "parallel"),
            vmem_limit_bytes=vmem_limit),
    )(xv, g_e, g_o, b_e, b_o, w_e, w_o)

    if Wo != Wo_real:
        out = out[:, :Wo_real, :]
    return out.reshape(B, Ho * Wo_real, C2)


def _reference(x, H, W, weight, gamma, beta, eps=1e-5):
    B, L, C = x.shape
    x = x.reshape(B, H, W, C)
    if (H % 2) or (W % 2):
        x = jnp.pad(x, ((0, 0), (0, H % 2), (0, W % 2), (0, 0)))
    x0 = x[:, 0::2, 0::2, :]
    x1 = x[:, 1::2, 0::2, :]
    x2 = x[:, 0::2, 1::2, :]
    x3 = x[:, 1::2, 1::2, :]
    xm = jnp.concatenate([x0, x1, x2, x3], axis=-1)
    B_, Ho, Wo, C4 = xm.shape
    xm = xm.reshape(B_, Ho * Wo, C4).astype(jnp.float32)
    mean = jnp.mean(xm, axis=-1, keepdims=True)
    var = jnp.mean((xm - mean) ** 2, axis=-1, keepdims=True)
    xn = (xm - mean) / jnp.sqrt(var + eps)
    xn = xn * gamma + beta
    return jnp.einsum("blk,ok->blo", xn, weight.astype(jnp.float32))


if __name__ == "__main__":
    key = jax.random.PRNGKey(0)
    k1, k2, k3, k4 = jax.random.split(key, 4)

    B, H, W, dim = 2, 16, 16, 64                  # x: (B, H*W, dim)
    x = jax.random.normal(k1, (B, H * W, dim), dtype=jnp.float32)

    # nn.Linear(4*dim, 2*dim, bias=False): weight (2*dim, 4*dim)
    weight = jax.random.normal(k2, (2 * dim, 4 * dim), dtype=jnp.float32) * 0.02
    # nn.LayerNorm(4*dim) affine params (deterministically perturbed)
    gamma = jnp.ones((4 * dim,), jnp.float32) + 0.1 * jax.random.normal(
        k3, (4 * dim,), dtype=jnp.float32)
    beta = 0.1 * jax.random.normal(k4, (4 * dim,), dtype=jnp.float32)

    out = patch_merging(x, H, W, weight, gamma, beta)
    out = jax.block_until_ready(out)

    ref = _reference(x, H, W, weight, gamma, beta)
    assert out.shape == (B, (H // 2) * (W // 2), 2 * dim), out.shape
    err = float(jnp.max(jnp.abs(out - ref)))
    assert jnp.allclose(out, ref, atol=1e-4, rtol=1e-4), f"mismatch vs reference: {err}"

    print("KERNEL_OK")
</pallas_src>

<mosaic_0001>
module attributes {stable_mosaic.version = 11 : i64} {
  func.func @_merge_ln_project_kernel(%arg0: i32, %arg1: i32, %arg2: memref<4x2x8x128xf32, #tpu.memory_space<vmem>>, %arg3: memref<1x128xf32, #tpu.memory_space<vmem>>, %arg4: memref<1x128xf32, #tpu.memory_space<vmem>>, %arg5: memref<1x128xf32, #tpu.memory_space<vmem>>, %arg6: memref<1x128xf32, #tpu.memory_space<vmem>>, %arg7: memref<128x128xf32, #tpu.memory_space<vmem>>, %arg8: memref<128x128xf32, #tpu.memory_space<vmem>>, %arg9: memref<4x8x128xf32, #tpu.memory_space<vmem>>) attributes {dimension_semantics = [#tpu.dimension_semantics<parallel>, #tpu.dimension_semantics<parallel>], iteration_bounds = array<i64: 4, 1>, scalar_prefetch = 0 : i64, scratch_operands = 0 : i64, tpu.core_type = #tpu.core_type<tc>, window_params = [{transform_indices = @transform_0, window_bounds = array<i64: 4, 2, 8, 128>}, {pipeline_mode = #tpu.pipeline_mode<synchronous>, transform_indices = @transform_1, window_bounds = array<i64: 1, 128>}, {pipeline_mode = #tpu.pipeline_mode<synchronous>, transform_indices = @transform_2, window_bounds = array<i64: 1, 128>}, {pipeline_mode = #tpu.pipeline_mode<synchronous>, transform_indices = @transform_3, window_bounds = array<i64: 1, 128>}, {pipeline_mode = #tpu.pipeline_mode<synchronous>, transform_indices = @transform_4, window_bounds = array<i64: 1, 128>}, {pipeline_mode = #tpu.pipeline_mode<synchronous>, transform_indices = @transform_5, window_bounds = array<i64: 128, 128>}, {pipeline_mode = #tpu.pipeline_mode<synchronous>, transform_indices = @transform_6, window_bounds = array<i64: 128, 128>}, {transform_indices = @transform_7, window_bounds = array<i64: 4, 8, 128>}]} {
    %c0 = arith.constant 0 : index
    %c0_0 = arith.constant 0 : index
    %c0_1 = arith.constant 0 : index
    %c0_2 = arith.constant 0 : index
    %0 = vector.load %arg2[%c0, %c0_0, %c0_1, %c0_2] : memref<4x2x8x128xf32, #tpu.memory_space<vmem>>, vector<4x1x8x128xf32>
    %1 = vector.shape_cast %0 : vector<4x1x8x128xf32> to vector<4x8x128xf32>
    %2 = vector.shape_cast %1 : vector<4x8x128xf32> to vector<32x128xf32>
    %c0_3 = arith.constant 0 : index
    %c1 = arith.constant 1 : index
    %c0_4 = arith.constant 0 : index
    %c0_5 = arith.constant 0 : index
    %3 = vector.load %arg2[%c0_3, %c1, %c0_4, %c0_5] : memref<4x2x8x128xf32, #tpu.memory_space<vmem>>, vector<4x1x8x128xf32>
    %4 = vector.shape_cast %3 : vector<4x1x8x128xf32> to vector<4x8x128xf32>
    %5 = vector.shape_cast %4 : vector<4x8x128xf32> to vector<32x128xf32>
    %c0_6 = arith.constant 0 : index
    %c0_7 = arith.constant 0 : index
    %6 = vector.load %arg3[%c0_6, %c0_7] : memref<1x128xf32, #tpu.memory_space<vmem>>, vector<1x128xf32>
    %c0_8 = arith.constant 0 : index
    %c0_9 = arith.constant 0 : index
    %7 = vector.load %arg4[%c0_8, %c0_9] : memref<1x128xf32, #tpu.memory_space<vmem>>, vector<1x128xf32>
    %c0_10 = arith.constant 0 : index
    %c0_11 = arith.constant 0 : index
    %8 = vector.load %arg5[%c0_10, %c0_11] : memref<1x128xf32, #tpu.memory_space<vmem>>, vector<1x128xf32>
    %c0_12 = arith.constant 0 : index
    %c0_13 = arith.constant 0 : index
    %9 = vector.load %arg6[%c0_12, %c0_13] : memref<1x128xf32, #tpu.memory_space<vmem>>, vector<1x128xf32>
    %c0_14 = arith.constant 0 : index
    %c0_15 = arith.constant 0 : index
    %10 = vector.load %arg7[%c0_14, %c0_15] : memref<128x128xf32, #tpu.memory_space<vmem>>, vector<128x128xf32>
    %c0_16 = arith.constant 0 : index
    %c0_17 = arith.constant 0 : index
    %11 = vector.load %arg8[%c0_16, %c0_17] : memref<128x128xf32, #tpu.memory_space<vmem>>, vector<128x128xf32>
    %cst = arith.constant dense<0.000000e+00> : vector<32xf32>
    %12 = vector.multi_reduction <add>, %2, %cst [1] : vector<32x128xf32> to vector<32xf32>
    %13 = vector.shape_cast %12 : vector<32xf32> to vector<32x1xf32>
    %cst_18 = arith.constant dense<0.000000e+00> : vector<32xf32>
    %14 = vector.multi_reduction <add>, %5, %cst_18 [1] : vector<32x128xf32> to vector<32xf32>
    %15 = vector.shape_cast %14 : vector<32xf32> to vector<32x1xf32>
    %16 = arith.addf %13, %15 : vector<32x1xf32>
    %17 = arith.mulf %2, %2 : vector<32x128xf32>
    %cst_19 = arith.constant dense<0.000000e+00> : vector<32xf32>
    %18 = vector.multi_reduction <add>, %17, %cst_19 [1] : vector<32x128xf32> to vector<32xf32>
    %19 = vector.shape_cast %18 : vector<32xf32> to vector<32x1xf32>
    %20 = arith.mulf %5, %5 : vector<32x128xf32>
    %cst_20 = arith.constant dense<0.000000e+00> : vector<32xf32>
    %21 = vector.multi_reduction <add>, %20, %cst_20 [1] : vector<32x128xf32> to vector<32xf32>
    %22 = vector.shape_cast %21 : vector<32xf32> to vector<32x1xf32>
    %23 = arith.addf %19, %22 : vector<32x1xf32>
    %cst_21 = arith.constant 3.906250e-03 : f32
    %24 = vector.broadcast %cst_21 : f32 to vector<32x1xf32>
    %25 = arith.mulf %16, %24 : vector<32x1xf32>
    %cst_22 = arith.constant 3.906250e-03 : f32
    %26 = vector.broadcast %cst_22 : f32 to vector<32x1xf32>
    %27 = arith.mulf %23, %26 : vector<32x1xf32>
    %28 = arith.mulf %25, %25 : vector<32x1xf32>
    %29 = arith.subf %27, %28 : vector<32x1xf32>
    %cst_23 = arith.constant 9.99999974E-6 : f32
    %30 = vector.broadcast %cst_23 : f32 to vector<32x1xf32>
    %31 = arith.addf %29, %30 : vector<32x1xf32>
    %32 = math.rsqrt %31 : vector<32x1xf32>
    %33 = vector.broadcast %25 : vector<32x1xf32> to vector<32x128xf32>
    %34 = arith.subf %2, %33 : vector<32x128xf32>
    %35 = vector.broadcast %32 : vector<32x1xf32> to vector<32x128xf32>
    %36 = vector.broadcast %6 : vector<1x128xf32> to vector<32x128xf32>
    %37 = arith.mulf %35, %36 : vector<32x128xf32>
    %38 = arith.mulf %34, %37 : vector<32x128xf32>
    %39 = vector.broadcast %8 : vector<1x128xf32> to vector<32x128xf32>
    %40 = arith.addf %38, %39 : vector<32x128xf32>
    %41 = vector.broadcast %25 : vector<32x1xf32> to vector<32x128xf32>
    %42 = arith.subf %5, %41 : vector<32x128xf32>
    %43 = vector.broadcast %32 : vector<32x1xf32> to vector<32x128xf32>
    %44 = vector.broadcast %7 : vector<1x128xf32> to vector<32x128xf32>
    %45 = arith.mulf %43, %44 : vector<32x128xf32>
    %46 = arith.mulf %42, %45 : vector<32x128xf32>
    %47 = vector.broadcast %9 : vector<1x128xf32> to vector<32x128xf32>
    %48 = arith.addf %46, %47 : vector<32x128xf32>
    %cst_24 = arith.constant dense<0.000000e+00> : vector<32x128xf32>
    %49 = tpu.matmul %40, %10, %cst_24 {dimension_numbers = #tpu.dot_dimension_numbers<[1], [0], [0], [1], [0, 0, 1, 1], [], []>} : vector<32x128xf32>, vector<128x128xf32>, vector<32x128xf32> -> vector<32x128xf32>
    %cst_25 = arith.constant dense<0.000000e+00> : vector<32x128xf32>
    %50 = tpu.matmul %48, %11, %cst_25 {dimension_numbers = #tpu.dot_dimension_numbers<[1], [0], [0], [1], [0, 0, 1, 1], [], []>} : vector<32x128xf32>, vector<128x128xf32>, vector<32x128xf32> -> vector<32x128xf32>
    %51 = arith.addf %49, %50 : vector<32x128xf32>
    %52 = vector.shape_cast %51 : vector<32x128xf32> to vector<4x8x128xf32>
    %c0_26 = arith.constant 0 : index
    %c0_27 = arith.constant 0 : index
    %c0_28 = arith.constant 0 : index
    %53 = vector.load %arg9[%c0_26, %c0_27, %c0_28] : memref<4x8x128xf32, #tpu.memory_space<vmem>>, vector<4x8x128xf32>
    tpu.vector_store %arg9[%c0_26, %c0_27, %c0_28], %52 {strides = array<i32>} : memref<4x8x128xf32, #tpu.memory_space<vmem>>, vector<4x8x128xf32>,
    return
  }
  func.func @transform_0(%arg0: i32, %arg1: i32) -> (i32, i32, i32, i32) {
    %c0_i32 = arith.constant 0 : i32
    %c0_i32_0 = arith.constant 0 : i32
    %c0_i32_1 = arith.constant 0 : i32
    return %arg0, %c0_i32, %arg1, %c0_i32_0 : i32, i32, i32, i32
  }
  func.func @transform_1(%arg0: i32, %arg1: i32) -> (i32, i32) {
    %c0_i32 = arith.constant 0 : i32
    %c0_i32_0 = arith.constant 0 : i32
    %c0_i32_1 = arith.constant 0 : i32
    return %c0_i32, %c0_i32_0 : i32, i32
  }
  func.func @transform_2(%arg0: i32, %arg1: i32) -> (i32, i32) {
    %c0_i32 = arith.constant 0 : i32
    %c0_i32_0 = arith.constant 0 : i32
    %c0_i32_1 = arith.constant 0 : i32
    return %c0_i32, %c0_i32_0 : i32, i32
  }
  func.func @transform_3(%arg0: i32, %arg1: i32) -> (i32, i32) {
    %c0_i32 = arith.constant 0 : i32
    %c0_i32_0 = arith.constant 0 : i32
    %c0_i32_1 = arith.constant 0 : i32
    return %c0_i32, %c0_i32_0 : i32, i32
  }
  func.func @transform_4(%arg0: i32, %arg1: i32) -> (i32, i32) {
    %c0_i32 = arith.constant 0 : i32
    %c0_i32_0 = arith.constant 0 : i32
    %c0_i32_1 = arith.constant 0 : i32
    return %c0_i32, %c0_i32_0 : i32, i32
  }
  func.func @transform_5(%arg0: i32, %arg1: i32) -> (i32, i32) {
    %c0_i32 = arith.constant 0 : i32
    %c0_i32_0 = arith.constant 0 : i32
    %c0_i32_1 = arith.constant 0 : i32
    return %c0_i32, %c0_i32_0 : i32, i32
  }
  func.func @transform_6(%arg0: i32, %arg1: i32) -> (i32, i32) {
    %c0_i32 = arith.constant 0 : i32
    %c0_i32_0 = arith.constant 0 : i32
    %c0_i32_1 = arith.constant 0 : i32
    return %c0_i32, %c0_i32_0 : i32, i32
  }
  func.func @transform_7(%arg0: i32, %arg1: i32) -> (i32, i32, i32) {
    %c0_i32 = arith.constant 0 : i32
    %c0_i32_0 = arith.constant 0 : i32
    return %arg0, %arg1, %c0_i32 : i32, i32, i32
  }
}

</mosaic_0001>

<llo_original>
// kernel: tpu_custom_call.1
$region0: #{tpu_custom_call.1}
  #allocation0 [shape = 'u32[]', space=smem, size = 0x4, offset = 0x4, fixed_abs, tag = 'smem constant byte address 0x4 - core index']
  #allocation1 [shape = 'u32[144,128]{1,0:T(1,128)}', space=vmem, size = 0x12000, scoped, tag = 'internal scratch']
  %s0 = inlined_call_operand.hbm [shape: f32[16,2,8,128], index: 0, kind: input, shape index: {}]
  %s1 = inlined_call_operand.vmem [shape: f32[1,128], index: 1, kind: input, shape index: {}]
  %s2 = inlined_call_operand.vmem [shape: f32[1,128], index: 2, kind: input, shape index: {}]
  %s3 = inlined_call_operand.vmem [shape: f32[1,128], index: 3, kind: input, shape index: {}]
  %s4 = inlined_call_operand.vmem [shape: f32[1,128], index: 4, kind: input, shape index: {}]
  %s5 = inlined_call_operand.hbm [shape: f32[128,128], index: 5, kind: input, shape index: {}]
  %s6 = inlined_call_operand.hbm [shape: f32[128,128], index: 6, kind: input, shape index: {}]
  %s7 = inlined_call_operand.hbm [shape: f32[16,8,128], index: 7, kind: output, shape index: {}]
  %s8 = sld [smem:[#allocation0]]
  $region73: #{tpu_custom_call.1} parent=0
    _
  %s10 = ssub.s32 1, %s8
  %s11 = scalar_select 0, %s10, %s8
  $region1: #{tpu_custom_call.1} parent=0
    #allocation2 [shape = 'u8[65536]{0}', space=vmem, size = 0x10000, scoped, tag = 'input window, operand 0']
    #allocation3 [shape = 's32[2]{0}', space=sflag, size = 0x8, scoped, tag = 'scoped memory for tpu_custom_call.1']
    #allocation4 [shape = 's32[2]{0}', space=sflag, size = 0x8, scoped, tag = 'scoped memory for tpu_custom_call.1']
    #allocation5 [shape = 'u8[65536]{0}', space=vmem, size = 0x10000, scoped, tag = 'input window, operand 5, single buffered']
    #allocation6 [shape = 's32[1]{0}', space=sflag, size = 0x4, scoped, tag = 'scoped memory for tpu_custom_call.1']
    #allocation7 [shape = 'u8[65536]{0}', space=vmem, size = 0x10000, scoped, tag = 'input window, operand 6, single buffered']
    #allocation8 [shape = 'u8[32768]{0}', space=vmem, size = 0x8000, scoped, tag = 'output window, operand 0']
    %12 = vsyncpa [#allocation3], 0
    %s13 = scalar_lea.sflag [#allocation3], 1
    %14 = vsyncpa %s13, 0
    %15 = vsyncpa [#allocation6], 0
    %16 = vsyncpa [#allocation4], 0
    %s17 = scalar_lea.sflag [#allocation4], 1
    %18 = vsyncpa %s17, 0
    loop: start=0, step=1, limit=6
    $region2: #{tpu_custom_call.1} parent=1 // loop_pre_header
      _
    $region3: #{tpu_custom_call.1} parent=1 // loop_header
      %s20 = sphi 0, %s24
      %p21 = scmp.ge.s32.totalorder %s20, 6
      %s27 = sphi 0, %s39
      %s28 = sphi 0, %s35
      %s29 = sphi 0, %s27
      %s30 = sphi 0, %s28
      %s31 = sphi 0, %s29
      %s32 = sphi 0, %s30
      %s44 = sphi 0, %s46
      %s47 = sphi 0, %s44
      %s48 = sphi 0, %s47
      %s64 = sphi 0, %s48
      %s68 = sphi 0, %s68
      %s70 = sphi 0, %s68
      %s71 = sphi 0, %s70
      %s85 = sphi 0, %s71
      %s89 = sphi 0, %s89
      %s91 = sphi 0, %s89
      %s92 = sphi 0, %s91
      %s106 = sphi 0, %s92
      %s110 = sphi 0, %s110
      %s112 = sphi 0, %s110
      %s113 = sphi 0, %s112
      %s127 = sphi 0, %s113
      %s131 = sphi 0, %s131
      %s133 = sphi 0, %s131
      %s134 = sphi 0, %s133
      %s148 = sphi 0, %s134
      %s152 = sphi 0, %s152
      %s154 = sphi 0, %s152
      %s155 = sphi 0, %s154
      %s169 = sphi 0, %s155
      %s173 = sphi 0, %s173
      %s175 = sphi 0, %s173
      %s176 = sphi 0, %s175
      %s190 = sphi 0, %s176
      %s198 = sphi 0, %s200
      %s201 = sphi 0, %s198
      %s202 = sphi 0, %s201
      %s218 = sphi 0, %s202
    $region4: #{tpu_custom_call.1} parent=1 // loop_header_branch
      %23 = sbr.rel (%p21) target = $region8
    $region5: #{tpu_custom_call.1} parent=1 // loop_body
      %s25 = ssub.s32 %s20, 1
      %s26 = ssub.s32 %s20, 2
      %s33 = sadd.s32 1, %s28
      %p34 = scmp.ge.s32.totalorder %s33, 1
      %s35 = scalar_select %p34, 0, %s33
      %s36 = sadd.s32 1, %s27
      %s37 = scalar_select %p34, %s36, %s27
      %p38 = scmp.ge.s32.totalorder %s37, 4
      %s39 = scalar_select %p38, 0, %s37
      %s40 = ssub.s32 %s27, %s39
      %s41 = ssub.s32 %s28, %s35
      %s42 = sor.u32 %s40, %s41
      %p43 = scmp.eq.s32.totalorder %s42, 0
      %s45 = sadd.s32 %s44, 1
      %s46 = scalar_select %p43, %s44, %s45
      %p49 = pneg %p43
      %p50 = scmp.eq.s32.totalorder %s20, 3
      %p51 = por %p49, %p50
      %p52 = scmp.ne.s32.totalorder %s44, %s47
      %p53 = scmp.eq.s32.totalorder %s20, 0
      %p54 = por %p52, %p53
      %p55 = scmp.ne.s32.totalorder %s44, %s47
      %p56 = scmp.eq.s32.totalorder %s25, 3
      %p57 = por %p55, %p56
      %p58 = scmp.ne.s32.totalorder %s47, %s48
      %p59 = scmp.eq.s32.totalorder %s25, 0
      %p60 = por %p58, %p59
      %p61 = scmp.ne.s32.totalorder %s47, %s48
      %p62 = scmp.eq.s32.totalorder %s26, 3
      %p63 = por %p61, %p62
      %p65 = scmp.ne.s32.totalorder %s48, %s64
      %p66 = scmp.eq.s32.totalorder %s26, 0
      %p67 = por %p65, %p66
      %s69 = sadd.s32 %s68, 1
      %p72 = scmp.eq.s32.totalorder %s20, 3
      %p73 = scmp.ne.s32.totalorder %s68, %s70
      %p74 = scmp.eq.s32.totalorder %s20, 0
      %p75 = por %p73, %p74
      %p76 = scmp.ne.s32.totalorder %s68, %s70
      %p77 = scmp.eq.s32.totalorder %s25, 3
      %p78 = por %p76, %p77
      %p79 = scmp.ne.s32.totalorder %s70, %s71
      %p80 = scmp.eq.s32.totalorder %s25, 0
      %p81 = por %p79, %p80
      %p82 = scmp.ne.s32.totalorder %s70, %s71
      %p83 = scmp.eq.s32.totalorder %s26, 3
      %p84 = por %p82, %p83
      %p86 = scmp.ne.s32.totalorder %s71, %s85
      %p87 = scmp.eq.s32.totalorder %s26, 0
      %p88 = por %p86, %p87
      %s90 = sadd.s32 %s89, 1
      %p93 = scmp.eq.s32.totalorder %s20, 3
      %p94 = scmp.ne.s32.totalorder %s89, %s91
      %p95 = scmp.eq.s32.totalorder %s20, 0
      %p96 = por %p94, %p95
      %p97 = scmp.ne.s32.totalorder %s89, %s91
      %p98 = scmp.eq.s32.totalorder %s25, 3
      %p99 = por %p97, %p98
      %p100 = scmp.ne.s32.totalorder %s91, %s92
      %p101 = scmp.eq.s32.totalorder %s25, 0
      %p102 = por %p100, %p101
      %p103 = scmp.ne.s32.totalorder %s91, %s92
      %p104 = scmp.eq.s32.totalorder %s26, 3
      %p105 = por %p103, %p104
      %p107 = scmp.ne.s32.totalorder %s92, %s106
      %p108 = scmp.eq.s32.totalorder %s26, 0
      %p109 = por %p107, %p108
      %s111 = sadd.s32 %s110, 1
      %p114 = scmp.eq.s32.totalorder %s20, 3
      %p115 = scmp.ne.s32.totalorder %s110, %s112
      %p116 = scmp.eq.s32.totalorder %s20, 0
      %p117 = por %p115, %p116
      %p118 = scmp.ne.s32.totalorder %s110, %s112
      %p119 = scmp.eq.s32.totalorder %s25, 3
      %p120 = por %p118, %p119
      %p121 = scmp.ne.s32.totalorder %s112, %s113
      %p122 = scmp.eq.s32.totalorder %s25, 0
      %p123 = por %p121, %p122
      %p124 = scmp.ne.s32.totalorder %s112, %s113
      %p125 = scmp.eq.s32.totalorder %s26, 3
      %p126 = por %p124, %p125
      %p128 = scmp.ne.s32.totalorder %s113, %s127
      %p129 = scmp.eq.s32.totalorder %s26, 0
      %p130 = por %p128, %p129
      %s132 = sadd.s32 %s131, 1
      %p135 = scmp.eq.s32.totalorder %s20, 3
      %p136 = scmp.ne.s32.totalorder %s131, %s133
      %p137 = scmp.eq.s32.totalorder %s20, 0
      %p138 = por %p136, %p137
      %p139 = scmp.ne.s32.totalorder %s131, %s133
      %p140 = scmp.eq.s32.totalorder %s25, 3
      %p141 = por %p139, %p140
      %p142 = scmp.ne.s32.totalorder %s133, %s134
      %p143 = scmp.eq.s32.totalorder %s25, 0
      %p144 = por %p142, %p143
      %p145 = scmp.ne.s32.totalorder %s133, %s134
      %p146 = scmp.eq.s32.totalorder %s26, 3
      %p147 = por %p145, %p146
      %p149 = scmp.ne.s32.totalorder %s134, %s148
      %p150 = scmp.eq.s32.totalorder %s26, 0
      %p151 = por %p149, %p150
      %s153 = sadd.s32 %s152, 1
      %p156 = scmp.eq.s32.totalorder %s20, 3
      %p157 = scmp.ne.s32.totalorder %s152, %s154
      %p158 = scmp.eq.s32.totalorder %s20, 0
      %p159 = por %p157, %p158
      %p160 = scmp.ne.s32.totalorder %s152, %s154
      %p161 = scmp.eq.s32.totalorder %s25, 3
      %p162 = por %p160, %p161
      %p163 = scmp.ne.s32.totalorder %s154, %s155
      %p164 = scmp.eq.s32.totalorder %s25, 0
      %p165 = por %p163, %p164
      %p166 = scmp.ne.s32.totalorder %s154, %s155
      %p167 = scmp.eq.s32.totalorder %s26, 3
      %p168 = por %p166, %p167
      %p170 = scmp.ne.s32.totalorder %s155, %s169
      %p171 = scmp.eq.s32.totalorder %s26, 0
      %p172 = por %p170, %p171
      %s174 = sadd.s32 %s173, 1
      %p177 = scmp.eq.s32.totalorder %s20, 3
      %p178 = scmp.ne.s32.totalorder %s173, %s175
      %p179 = scmp.eq.s32.totalorder %s20, 0
      %p180 = por %p178, %p179
      %p181 = scmp.ne.s32.totalorder %s173, %s175
      %p182 = scmp.eq.s32.totalorder %s25, 3
      %p183 = por %p181, %p182
      %p184 = scmp.ne.s32.totalorder %s175, %s176
      %p185 = scmp.eq.s32.totalorder %s25, 0
      %p186 = por %p184, %p185
      %p187 = scmp.ne.s32.totalorder %s175, %s176
      %p188 = scmp.eq.s32.totalorder %s26, 3
      %p189 = por %p187, %p188
      %p191 = scmp.ne.s32.totalorder %s176, %s190
      %p192 = scmp.eq.s32.totalorder %s26, 0
      %p193 = por %p191, %p192
      %s194 = ssub.s32 %s27, %s39
      %s195 = ssub.s32 %s28, %s35
      %s196 = sor.u32 %s194, %s195
      %p197 = scmp.eq.s32.totalorder %s196, 0
      %s199 = sadd.s32 %s198, 1
      %s200 = scalar_select %p197, %s198, %s199
      %p203 = pneg %p197
      %p204 = scmp.eq.s32.totalorder %s20, 3
      %p205 = por %p203, %p204
      %p206 = scmp.ne.s32.totalorder %s198, %s201
      %p207 = scmp.eq.s32.totalorder %s20, 0
      %p208 = por %p206, %p207
      %p209 = scmp.ne.s32.totalorder %s198, %s201
      %p210 = scmp.eq.s32.totalorder %s25, 3
      %p211 = por %p209, %p210
      %p212 = scmp.ne.s32.totalorder %s201, %s202
      %p213 = scmp.eq.s32.totalorder %s25, 0
      %p214 = por %p212, %p213
      %p215 = scmp.ne.s32.totalorder %s201, %s202
      %p216 = scmp.eq.s32.totalorder %s26, 3
      %p217 = por %p215, %p216
      %p219 = scmp.ne.s32.totalorder %s202, %s218
      %p220 = scmp.eq.s32.totalorder %s26, 0
      %p221 = por %p219, %p220
      %p222 = scmp.le.s32.totalorder 1, %s20
      %p223 = scmp.lt.s32.totalorder %s20, 5
      %p224 = pnand %p222, %p223
      %p225 = pneg %p224
      // Predicated region
      $region9: #{tpu_custom_call.1} parent=5 // pred_check
        _
      $region10: #{tpu_custom_call.1} parent=5 // pred_check_branch
        %227 = sbr.rel (%p224) target = $region12
      $region11: #{tpu_custom_call.1} parent=5 // pred_region
        %s228 = ssub.s32 %s20, 1
        // Predicated region
        $region13: #{tpu_custom_call.1} parent=11 // pred_check
          %p229 = pneg %p81
        $region14: #{tpu_custom_call.1} parent=11 // pred_check_branch
          %231 = sbr.rel (%p229) target = $region16
        $region15: #{tpu_custom_call.1} parent=11 // pred_region
          _
        $region16: #{tpu_custom_call.1} parent=11 // pred_fallthru
          _
        // Predicated region
        $region17: #{tpu_custom_call.1} parent=11 // pred_check
          %p232 = pneg %p102
        $region18: #{tpu_custom_call.1} parent=11 // pred_check_branch
          %234 = sbr.rel (%p232) target = $region20
        $region19: #{tpu_custom_call.1} parent=11 // pred_region
          _
        $region20: #{tpu_custom_call.1} parent=11 // pred_fallthru
          _
        // Predicated region
        $region21: #{tpu_custom_call.1} parent=11 // pred_check
          %p235 = pneg %p123
        $region22: #{tpu_custom_call.1} parent=11 // pred_check_branch
          %237 = sbr.rel (%p235) target = $region24
        $region23: #{tpu_custom_call.1} parent=11 // pred_region
          _
        $region24: #{tpu_custom_call.1} parent=11 // pred_fallthru
          _
        // Predicated region
        $region25: #{tpu_custom_call.1} parent=11 // pred_check
          %p238 = pneg %p144
        $region26: #{tpu_custom_call.1} parent=11 // pred_check_branch
          %240 = sbr.rel (%p238) target = $region28
        $region27: #{tpu_custom_call.1} parent=11 // pred_region
          _
        $region28: #{tpu_custom_call.1} parent=11 // pred_fallthru
          _
        // Predicated region
        $region29: #{tpu_custom_call.1} parent=11 // pred_check
          %p241 = pneg %p165
        $region30: #{tpu_custom_call.1} parent=11 // pred_check_branch
          %243 = sbr.rel (%p241) target = $region32
        $region31: #{tpu_custom_call.1} parent=11 // pred_region
          %s245 = ssub.s32 2048, 2048
          %246 = vsyncadd [#allocation6], %s245
          %s247 = sshll.u32 [#allocation5], 4
          %s248 = int_to_ptr.vmem [resolvable:$true] %s247
          %253 = dma.hbm_to_vmem [thread:$0]  %s5, 2048, %s248, [#allocation6], 128, 128, 8
        $region32: #{tpu_custom_call.1} parent=11 // pred_fallthru
          _
        // Predicated region
        $region33: #{tpu_custom_call.1} parent=11 // pred_check
          %p254 = pneg %p186
        $region34: #{tpu_custom_call.1} parent=11 // pred_check_branch
          %256 = sbr.rel (%p254) target = $region36
        $region35: #{tpu_custom_call.1} parent=11 // pred_region
          %s258 = ssub.s32 2048, 2048
          %259 = vsyncadd [#allocation6], %s258
          %s260 = sshll.u32 [#allocation7], 4
          %s261 = int_to_ptr.vmem [resolvable:$true] %s260
          %266 = dma.hbm_to_vmem [thread:$0]  %s6, 2048, %s261, [#allocation6], 128, 128, 8
        $region36: #{tpu_custom_call.1} parent=11 // pred_fallthru
          _
      $region12: #{tpu_custom_call.1} parent=5 // pred_fallthru
        _
      %p267 = scmp.lt.s32.totalorder %s20, 4
      // Predicated region
      $region37: #{tpu_custom_call.1} parent=5 // pred_check
        %p268 = pneg %p267
      $region38: #{tpu_custom_call.1} parent=5 // pred_check_branch
        %270 = sbr.rel (%p268) target = $region40
      $region39: #{tpu_custom_call.1} parent=5 // pred_region
        // Predicated region
        $region41: #{tpu_custom_call.1} parent=39 // pred_check
          %p271 = pneg %p54
        $region42: #{tpu_custom_call.1} parent=39 // pred_check_branch
          %273 = sbr.rel (%p271) target = $region44
        $region43: #{tpu_custom_call.1} parent=39 // pred_region
          %s274 = sand.u32 %s44, 1
          %s275 = scalar_lea.sflag [#allocation3], %s274
          %s276 = sand.u32 %s44, 1
          %s277 = smul.addr %s276, 64
          %s278 = scalar_lea.vmem [#allocation2], %s277
          %s279 = smul.u32 4, %s27
          %s281 = ssub.s32 1024, 1024
          %282 = vsyncadd %s275, %s281
          %s283 = smul.addr %s279, 2
          %s284 = sadd.s32 %s28, %s283
          %s285 = smul.addr %s284, 128
          %s286 = scalar_lea.hbm %s0, %s285
          %s287 = sshll.u32 %s278, 4
          %s288 = int_to_ptr.vmem [resolvable:$true] %s287
          %293 = dma.hbm_to_vmem [thread:$0]  %s286, 1024, %s288, %s275, 128, 128, 8
        $region44: #{tpu_custom_call.1} parent=39 // pred_fallthru
          _
      $region40: #{tpu_custom_call.1} parent=5 // pred_fallthru
        _
      %p294 = scmp.le.s32.totalorder 1, %s20
      %p295 = scmp.lt.s32.totalorder %s20, 5
      %p296 = pnand %p294, %p295
      %p297 = pneg %p296
      // Predicated region
      $region45: #{tpu_custom_call.1} parent=5 // pred_check
        _
      $region46: #{tpu_custom_call.1} parent=5 // pred_check_branch
        %299 = sbr.rel (%p296) target = $region48
      $region47: #{tpu_custom_call.1} parent=5 // pred_region
        %s300 = ssub.s32 %s20, 1
        %s301 = sand.u32 %s47, 1
        %s302 = scalar_lea.sflag [#allocation3], %s301
        %s303 = sand.u32 %s47, 1
        %s304 = smul.addr %s303, 64
        %s305 = scalar_lea.vmem [#allocation2], %s304
        // Predicated region
        $region49: #{tpu_custom_call.1} parent=47 // pred_check
          %p306 = pneg %p60
        $region50: #{tpu_custom_call.1} parent=47 // pred_check_branch
          %308 = sbr.rel (%p306) target = $region52
        $region51: #{tpu_custom_call.1} parent=47 // pred_region
          %309 = dma.done %s302, 1024
        $region52: #{tpu_custom_call.1} parent=47 // pred_fallthru
          _
        // Predicated region
        $region53: #{tpu_custom_call.1} parent=47 // pred_check
          %p310 = pneg %p165
        $region54: #{tpu_custom_call.1} parent=47 // pred_check_branch
          %312 = sbr.rel (%p310) target = $region56
        $region55: #{tpu_custom_call.1} parent=47 // pred_region
          %313 = dma.done [#allocation6], 2048
        $region56: #{tpu_custom_call.1} parent=47 // pred_fallthru
          _
        // Predicated region
        $region57: #{tpu_custom_call.1} parent=47 // pred_check
          %p314 = pneg %p186
        $region58: #{tpu_custom_call.1} parent=47 // pred_check_branch
          %316 = sbr.rel (%p314) target = $region60
        $region59: #{tpu_custom_call.1} parent=47 // pred_region
          %317 = dma.done [#allocation6], 2048
        $region60: #{tpu_custom_call.1} parent=47 // pred_fallthru
          _
        %s318 = sand.u32 %s47, 1
        %s319 = scalar_lea.sflag [#allocation3], %s318
        %s320 = sand.u32 %s47, 1
        %s321 = smul.addr %s320, 64
        %s322 = scalar_lea.vmem [#allocation2], %s321
        %p323 = pneg %p60
        %p324 = pneg %p57
        %p325 = pneg %p81
        %p326 = pneg %p78
        %p327 = pneg %p102
        %p328 = pneg %p99
        %p329 = pneg %p123
        %p330 = pneg %p120
        %p331 = pneg %p144
        %p332 = pneg %p141
        %p333 = pneg %p165
        %p334 = pneg %p162
        %p335 = pneg %p186
        %p336 = pneg %p183
        %p337 = pneg %p214
        %p338 = pneg %p211
        %s339 = sand.u32 %s201, 1
        %s340 = scalar_lea.sflag [#allocation4], %s339
        %s341 = sand.u32 %s201, 1
        %s342 = smul.addr %s341, 32
        %s343 = scalar_lea.vmem [#allocation8], %s342
        %s344 = smul.u32 4, %s29
        %s345 = smul.u32 4, %s29
        %v346 = vld [vmem:[%s305] sm:$0xff]
        %v347 = vld [vmem:[%s305 + $0x10] sm:$0xff]
        %v348 = vld [vmem:[%s305 + $0x20] sm:$0xff]
        %v349 = vld [vmem:[%s305 + $0x30] sm:$0xff]
        %s350 = scalar_lea.vmem %s305, 8 [#allocation2]
        %v351 = vld [vmem:[%s350] sm:$0xff]
        %v352 = vld [vmem:[%s350 + $0x10] sm:$0xff]
        %v353 = vld [vmem:[%s350 + $0x20] sm:$0xff]
        %v354 = vld [vmem:[%s350 + $0x30] sm:$0xff]
        %v355 = vld [vmem:[%s1] sm:$0x1]
        %v356 = vld [vmem:[%s2] sm:$0x1]
        %v357 = vld [vmem:[%s3] sm:$0x1]
        %v358 = vld [vmem:[%s4] sm:$0x1]
        %v359 = vld [vmem:[#allocation5] sm:$0xff]
        %v360 = vld [vmem:[#allocation5 + $0x8] sm:$0xff]
        %v361 = vld [vmem:[#allocation5 + $0x10] sm:$0xff]
        %v362 = vld [vmem:[#allocation5 + $0x18] sm:$0xff]
        %v363 = vld [vmem:[#allocation5 + $0x20] sm:$0xff]
        %v364 = vld [vmem:[#allocation5 + $0x28] sm:$0xff]
        %v365 = vld [vmem:[#allocation5 + $0x30] sm:$0xff]
        %v366 = vld [vmem:[#allocation5 + $0x38] sm:$0xff]
        %v367 = vld [vmem:[#allocation5 + $0x40] sm:$0xff]
        %v368 = vld [vmem:[#allocation5 + $0x48] sm:$0xff]
        %v369 = vld [vmem:[#allocation5 + $0x50] sm:$0xff]
        %v370 = vld [vmem:[#allocation5 + $0x58] sm:$0xff]
        %v371 = vld [vmem:[#allocation5 + $0x60] sm:$0xff]
        %v372 = vld [vmem:[#allocation5 + $0x68] sm:$0xff]
        %v373 = vld [vmem:[#allocation5 + $0x70] sm:$0xff]
        %v374 = vld [vmem:[#allocation5 + $0x78] sm:$0xff]
        %v375 = vld [vmem:[#allocation7] sm:$0xff]
        %v376 = vld [vmem:[#allocation7 + $0x8] sm:$0xff]
        %v377 = vld [vmem:[#allocation7 + $0x10] sm:$0xff]
        %v378 = vld [vmem:[#allocation7 + $0x18] sm:$0xff]
        %v379 = vld [vmem:[#allocation7 + $0x20] sm:$0xff]
        %v380 = vld [vmem:[#allocation7 + $0x28] sm:$0xff]
        %v381 = vld [vmem:[#allocation7 + $0x30] sm:$0xff]
        %v382 = vld [vmem:[#allocation7 + $0x38] sm:$0xff]
        %v383 = vld [vmem:[#allocation7 + $0x40] sm:$0xff]
        %v384 = vld [vmem:[#allocation7 + $0x48] sm:$0xff]
        %v385 = vld [vmem:[#allocation7 + $0x50] sm:$0xff]
        %v386 = vld [vmem:[#allocation7 + $0x58] sm:$0xff]
        %v387 = vld [vmem:[#allocation7 + $0x60] sm:$0xff]
        %v388 = vld [vmem:[#allocation7 + $0x68] sm:$0xff]
        %v389 = vld [vmem:[#allocation7 + $0x70] sm:$0xff]
        %v390 = vld [vmem:[#allocation7 + $0x78] sm:$0xff]
        %391 = vadd.xlane.f32.xlu0 %v346
        %v392 = vpop.xlane.xlu0 %391
        %393 = vadd.xlane.f32.xlu0 %v347
        %v394 = vpop.xlane.xlu0 %393
        %395 = vadd.xlane.f32.xlu0 %v348
        %v396 = vpop.xlane.xlu0 %395
        %397 = vadd.xlane.f32.xlu0 %v349
        %v398 = vpop.xlane.xlu0 %397
        %399 = vadd.xlane.f32.xlu0 %v351
        %v400 = vpop.xlane.xlu0 %399
        %401 = vadd.xlane.f32.xlu0 %v352
        %v402 = vpop.xlane.xlu0 %401
        %403 = vadd.xlane.f32.xlu0 %v353
        %v404 = vpop.xlane.xlu0 %403
        %405 = vadd.xlane.f32.xlu0 %v354
        %v406 = vpop.xlane.xlu0 %405
        %v407 = vadd.f32 %v392, %v400
        %v408 = vadd.f32 %v394, %v402
        %v409 = vadd.f32 %v396, %v404
        %v410 = vadd.f32 %v398, %v406
        %v411 = vmul.f32 %v346, %v346
        %v412 = vmul.f32 %v347, %v347
        %v413 = vmul.f32 %v348, %v348
        %v414 = vmul.f32 %v349, %v349
        %415 = vadd.xlane.f32.xlu0 %v411
        %v416 = vpop.xlane.xlu0 %415
        %417 = vadd.xlane.f32.xlu0 %v412
        %v418 = vpop.xlane.xlu0 %417
        %419 = vadd.xlane.f32.xlu0 %v413
        %v420 = vpop.xlane.xlu0 %419
        %421 = vadd.xlane.f32.xlu0 %v414
        %v422 = vpop.xlane.xlu0 %421
        %v423 = vmul.f32 %v351, %v351
        %v424 = vmul.f32 %v352, %v352
        %v425 = vmul.f32 %v353, %v353
        %v426 = vmul.f32 %v354, %v354
        %427 = vadd.xlane.f32.xlu0 %v423
        %v428 = vpop.xlane.xlu0 %427
        %429 = vadd.xlane.f32.xlu0 %v424
        %v430 = vpop.xlane.xlu0 %429
        %431 = vadd.xlane.f32.xlu0 %v425
        %v432 = vpop.xlane.xlu0 %431
        %433 = vadd.xlane.f32.xlu0 %v426
        %v434 = vpop.xlane.xlu0 %433
        %v435 = vadd.f32 %v416, %v428
        %v436 = vadd.f32 %v418, %v430
        %v437 = vadd.f32 %v420, %v432
        %v438 = vadd.f32 %v422, %v434
        %v439 = vmul.f32 %v407, 0.00390625
        %v440 = vmul.f32 %v408, 0.00390625
        %v441 = vmul.f32 %v409, 0.00390625
        %v442 = vmul.f32 %v410, 0.00390625
        %v443 = vmul.f32 %v435, 0.00390625
        %v444 = vmul.f32 %v436, 0.00390625
        %v445 = vmul.f32 %v437, 0.00390625
        %v446 = vmul.f32 %v438, 0.00390625
        %v447 = vmul.f32 %v439, %v439
        %v448 = vmul.f32 %v440, %v440
        %v449 = vmul.f32 %v441, %v441
        %v450 = vmul.f32 %v442, %v442
        %v451 = vsub.f32 %v443, %v447
        %v452 = vsub.f32 %v444, %v448
        %v453 = vsub.f32 %v445, %v449
        %v454 = vsub.f32 %v446, %v450
        %v455 = vadd.f32 %v451, 1e-05
        %v456 = vadd.f32 %v452, 1e-05
        %v457 = vadd.f32 %v453, 1e-05
        %v458 = vadd.f32 %v454, 1e-05
        %v459 = vrsqrt.pop %v455
        %v460 = vrsqrt.pop %v456
        %v461 = vrsqrt.pop %v457
        %v462 = vrsqrt.pop %v458
        %v463 = vsub.f32 %v346, %v439
        %v464 = vsub.f32 %v347, %v440
        %v465 = vsub.f32 %v348, %v441
        %v466 = vsub.f32 %v349, %v442
        %v468 = vlaneseq
        %v469 = vshrl.u32 %v468, 7
        %v470 = vsub.s32 0, %v469
        %v471 = vrot.slane %v355, %v470
        %v473 = vmul.f32 %v459, %v471
        %v474 = vmul.f32 %v460, %v471
        %v475 = vmul.f32 %v461, %v471
        %v476 = vmul.f32 %v462, %v471
        %v477 = vmul.f32 %v463, %v473
        %v478 = vmul.f32 %v464, %v474
        %v479 = vmul.f32 %v465, %v475
        %v480 = vmul.f32 %v466, %v476
        %v482 = vlaneseq
        %v483 = vshrl.u32 %v482, 7
        %v484 = vsub.s32 0, %v483
        %v485 = vrot.slane %v357, %v484
        %v487 = vadd.f32 %v477, %v485
        %v488 = vadd.f32 %v478, %v485
        %v489 = vadd.f32 %v479, %v485
        %v490 = vadd.f32 %v480, %v485
        %v491 = vsub.f32 %v351, %v439
        %v492 = vsub.f32 %v352, %v440
        %v493 = vsub.f32 %v353, %v441
        %v494 = vsub.f32 %v354, %v442
        %v496 = vlaneseq
        %v497 = vshrl.u32 %v496, 7
        %v498 = vsub.s32 0, %v497
        %v499 = vrot.slane %v356, %v498
        %v501 = vmul.f32 %v459, %v499
        %v502 = vmul.f32 %v460, %v499
        %v503 = vmul.f32 %v461, %v499
        %v504 = vmul.f32 %v462, %v499
        %v505 = vmul.f32 %v491, %v501
        %v506 = vmul.f32 %v492, %v502
        %v507 = vmul.f32 %v493, %v503
        %v508 = vmul.f32 %v494, %v504
        %v510 = vlaneseq
        %v511 = vshrl.u32 %v510, 7
        %v512 = vsub.s32 0, %v511
        %v513 = vrot.slane %v358, %v512
        %v515 = vadd.f32 %v505, %v513
        %v516 = vadd.f32 %v506, %v513
        %v517 = vadd.f32 %v507, %v513
        %v518 = vadd.f32 %v508, %v513
        %519 = vmatprep.subr.mxu0 0.0
        %520 = vmatpush1.msra.mxu0 %v390
        %521 = vmatprep.subr.mxu0 0.0
        %522 = vmatpush1.msra.mxu0 %v389
        %523 = vmatprep.subr.mxu0 0.0
        %524 = vmatpush1.msra.mxu0 %v388
        %525 = vmatprep.subr.mxu0 0.0
        %526 = vmatpush1.msra.mxu0 %v387
        %527 = vmatprep.subr.mxu0 0.0
        %528 = vmatpush1.msra.mxu0 %v386
        %529 = vmatprep.subr.mxu0 0.0
        %530 = vmatpush1.msra.mxu0 %v385
        %531 = vmatprep.subr.mxu0 0.0
        %532 = vmatpush1.msra.mxu0 %v384
        %533 = vmatprep.subr.mxu0 0.0
        %534 = vmatpush1.msra.mxu0 %v383
        %535 = vmatprep.subr.mxu0 0.0
        %536 = vmatpush1.msra.mxu0 %v382
        %537 = vmatprep.subr.mxu0 0.0
        %538 = vmatpush1.msra.mxu0 %v381
        %539 = vmatprep.subr.mxu0 0.0
        %540 = vmatpush1.msra.mxu0 %v380
        %541 = vmatprep.subr.mxu0 0.0
        %542 = vmatpush1.msra.mxu0 %v379
        %543 = vmatprep.subr.mxu0 0.0
        %544 = vmatpush1.msra.mxu0 %v378
        %545 = vmatprep.subr.mxu0 0.0
        %546 = vmatpush1.msra.mxu0 %v377
        %547 = vmatprep.subr.mxu0 0.0
        %548 = vmatpush1.msra.mxu0 %v376
        %549 = vmatprep.subr.mxu0 0.0
        %550 = vmatpush1.msra.mxu0 %v375
        %551 = vmatprep.subr.mxu0 0.0
        %552 = vmatpush2.msra.mxu0 0.0
        %553 = vmatprep.subr.mxu0 0.0
        %554 = vmatpush2.msra.mxu0 0.0
        %555 = vmatprep.subr.mxu0 0.0
        %556 = vmatpush2.msra.mxu0 0.0
        %557 = vmatprep.subr.mxu0 0.0
        %558 = vmatpush2.msra.mxu0 0.0
        %559 = vmatprep.subr.mxu0 0.0
        %560 = vmatpush2.msra.mxu0 0.0
        %561 = vmatprep.subr.mxu0 0.0
        %562 = vmatpush2.msra.mxu0 0.0
        %563 = vmatprep.subr.mxu0 0.0
        %564 = vmatpush2.msra.mxu0 0.0
        %565 = vmatprep.subr.mxu0 0.0
        %566 = vmatpush2.msra.mxu0 0.0
        %567 = vmatprep.subr.mxu0 0.0
        %568 = vmatpush2.msra.mxu0 0.0
        %569 = vmatprep.subr.mxu0 0.0
        %570 = vmatpush2.msra.mxu0 0.0
        %571 = vmatprep.subr.mxu0 0.0
        %572 = vmatpush2.msra.mxu0 0.0
        %573 = vmatprep.subr.mxu0 0.0
        %574 = vmatpush2.msra.mxu0 0.0
        %575 = vmatprep.subr.mxu0 0.0
        %576 = vmatpush2.msra.mxu0 0.0
        %577 = vmatprep.subr.mxu0 0.0
        %578 = vmatpush2.msra.mxu0 0.0
        %579 = vmatprep.subr.mxu0 0.0
        %580 = vmatpush2.msra.mxu0 0.0
        %581 = vmatprep.subr.mxu0 0.0
        %582 = vmatpush2.msra.mxu0 0.0
        %583 = vmatprep.mubr.f32.mxu0 0.0
        %584 = vmatmul.mubr.f32.gmra.mxu0 %v515
        %v585 = vpop.f32.mrf.mxu0
        %v586 = vadd.f32 0.0, %v585
        %v587 = vpop.f32.mrf.mxu0
        %588 = vmatprep.mubr.f32.mxu0 0.0
        %589 = vmatmul.mubr.f32.gmra.mxu0 %v516
        %v590 = vpop.f32.mrf.mxu0
        %v591 = vadd.f32 0.0, %v590
        %v592 = vpop.f32.mrf.mxu0
        %593 = vmatprep.mubr.f32.mxu0 0.0
        %594 = vmatmul.mubr.f32.gmra.mxu0 %v517
        %v595 = vpop.f32.mrf.mxu0
        %v596 = vadd.f32 0.0, %v595
        %v597 = vpop.f32.mrf.mxu0
        %598 = vmatprep.mubr.f32.mxu0 0.0
        %599 = vmatmul.mubr.f32.gmra.mxu0 %v518
        %v600 = vpop.f32.mrf.mxu0
        %v601 = vadd.f32 0.0, %v600
        %v602 = vpop.f32.mrf.mxu0
        %603 = vdwg.mxu0
        %604 = vmatprep.subr.mxu0 0.0
        %605 = vmatpush1.msra.mxu0 %v374
        %606 = vmatprep.subr.mxu0 0.0
        %607 = vmatpush1.msra.mxu0 %v373
        %608 = vmatprep.subr.mxu0 0.0
        %609 = vmatpush1.msra.mxu0 %v372
        %610 = vmatprep.subr.mxu0 0.0
        %611 = vmatpush1.msra.mxu0 %v371
        %612 = vmatprep.subr.mxu0 0.0
        %613 = vmatpush1.msra.mxu0 %v370
        %614 = vmatprep.subr.mxu0 0.0
        %615 = vmatpush1.msra.mxu0 %v369
        %616 = vmatprep.subr.mxu0 0.0
        %617 = vmatpush1.msra.mxu0 %v368
        %618 = vmatprep.subr.mxu0 0.0
        %619 = vmatpush1.msra.mxu0 %v367
        %620 = vmatprep.subr.mxu0 0.0
        %621 = vmatpush1.msra.mxu0 %v366
        %622 = vmatprep.subr.mxu0 0.0
        %623 = vmatpush1.msra.mxu0 %v365
        %624 = vmatprep.subr.mxu0 0.0
        %625 = vmatpush1.msra.mxu0 %v364
        %626 = vmatprep.subr.mxu0 0.0
        %627 = vmatpush1.msra.mxu0 %v363
        %628 = vmatprep.subr.mxu0 0.0
        %629 = vmatpush1.msra.mxu0 %v362
        %630 = vmatprep.subr.mxu0 0.0
        %631 = vmatpush1.msra.mxu0 %v361
        %632 = vmatprep.subr.mxu0 0.0
        %633 = vmatpush1.msra.mxu0 %v360
        %634 = vmatprep.subr.mxu0 0.0
        %635 = vmatpush1.msra.mxu0 %v359
        %636 = vmatprep.subr.mxu0 0.0
        %637 = vmatpush2.msra.mxu0 0.0
        %638 = vmatprep.subr.mxu0 0.0
        %639 = vmatpush2.msra.mxu0 0.0
        %640 = vmatprep.subr.mxu0 0.0
        %641 = vmatpush2.msra.mxu0 0.0
        %642 = vmatprep.subr.mxu0 0.0
        %643 = vmatpush2.msra.mxu0 0.0
        %644 = vmatprep.subr.mxu0 0.0
        %645 = vmatpush2.msra.mxu0 0.0
        %646 = vmatprep.subr.mxu0 0.0
        %647 = vmatpush2.msra.mxu0 0.0
        %648 = vmatprep.subr.mxu0 0.0
        %649 = vmatpush2.msra.mxu0 0.0
        %650 = vmatprep.subr.mxu0 0.0
        %651 = vmatpush2.msra.mxu0 0.0
        %652 = vmatprep.subr.mxu0 0.0
        %653 = vmatpush2.msra.mxu0 0.0
        %654 = vmatprep.subr.mxu0 0.0
        %655 = vmatpush2.msra.mxu0 0.0
        %656 = vmatprep.subr.mxu0 0.0
        %657 = vmatpush2.msra.mxu0 0.0
        %658 = vmatprep.subr.mxu0 0.0
        %659 = vmatpush2.msra.mxu0 0.0
        %660 = vmatprep.subr.mxu0 0.0
        %661 = vmatpush2.msra.mxu0 0.0
        %662 = vmatprep.subr.mxu0 0.0
        %663 = vmatpush2.msra.mxu0 0.0
        %664 = vmatprep.subr.mxu0 0.0
        %665 = vmatpush2.msra.mxu0 0.0
        %666 = vmatprep.subr.mxu0 0.0
        %667 = vmatpush2.msra.mxu0 0.0
        %668 = vmatprep.mubr.f32.mxu0 0.0
        %669 = vmatmul.mubr.f32.gmra.mxu0 %v487
        %v670 = vpop.f32.mrf.mxu0
        %v671 = vadd.f32 %v586, %v670
        %v672 = vpop.f32.mrf.mxu0
        %673 = vmatprep.mubr.f32.mxu0 0.0
        %674 = vmatmul.mubr.f32.gmra.mxu0 %v488
        %v675 = vpop.f32.mrf.mxu0
        %v676 = vadd.f32 %v591, %v675
        %v677 = vpop.f32.mrf.mxu0
        %678 = vmatprep.mubr.f32.mxu0 0.0
        %679 = vmatmul.mubr.f32.gmra.mxu0 %v489
        %v680 = vpop.f32.mrf.mxu0
        %v681 = vadd.f32 %v596, %v680
        %v682 = vpop.f32.mrf.mxu0
        %683 = vmatprep.mubr.f32.mxu0 0.0
        %684 = vmatmul.mubr.f32.gmra.mxu0 %v490
        %v685 = vpop.f32.mrf.mxu0
        %v686 = vadd.f32 %v601, %v685
        %v687 = vpop.f32.mrf.mxu0
        %688 = vdwg.mxu0
        %689 = vst [vmem:[%s343] sm:$0xff] %v671
        %690 = vst [vmem:[%s343 + $0x8] sm:$0xff] %v676
        %691 = vst [vmem:[%s343 + $0x10] sm:$0xff] %v681
        %692 = vst [vmem:[%s343 + $0x18] sm:$0xff] %v686
        %s693 = sand.u32 %s201, 1
        %s694 = scalar_lea.sflag [#allocation4], %s693
        %s695 = sand.u32 %s201, 1
        %s696 = smul.addr %s695, 32
        %s697 = scalar_lea.vmem [#allocation8], %s696
        // Predicated region
        $region61: #{tpu_custom_call.1} parent=47 // pred_check
          %p698 = pneg %p211
        $region62: #{tpu_custom_call.1} parent=47 // pred_check_branch
          %700 = sbr.rel (%p698) target = $region64
        $region63: #{tpu_custom_call.1} parent=47 // pred_region
          %s701 = smul.u32 4, %s29
          %s703 = ssub.s32 512, 512
          %704 = vsyncadd %s694, %s703
          %s705 = sadd.s32 %s30, %s701
          %s706 = smul.addr %s705, 128
          %s707 = scalar_lea.hbm %s7, %s706
          %s708 = sshll.u32 %s697, 4
          %s709 = int_to_ptr.vmem [resolvable:$true] %s708
          %714 = dma.vmem_to_hbm [thread:$0]  %s709, 512, %s707, %s694, 128, 128, 8
        $region64: #{tpu_custom_call.1} parent=47 // pred_fallthru
          _
      $region48: #{tpu_custom_call.1} parent=5 // pred_fallthru
        _
      %p715 = scmp.le.s32.totalorder 2, %s20
      // Predicated region
      $region65: #{tpu_custom_call.1} parent=5 // pred_check
        %p716 = pneg %p715
      $region66: #{tpu_custom_call.1} parent=5 // pred_check_branch
        %718 = sbr.rel (%p716) target = $region68
      $region67: #{tpu_custom_call.1} parent=5 // pred_region
        %s719 = ssub.s32 %s20, 2
        // Predicated region
        $region69: #{tpu_custom_call.1} parent=67 // pred_check
          %p720 = pneg %p217
        $region70: #{tpu_custom_call.1} parent=67 // pred_check_branch
          %722 = sbr.rel (%p720) target = $region72
        $region71: #{tpu_custom_call.1} parent=67 // pred_region
          %s723 = sand.u32 %s202, 1
          %s724 = scalar_lea.sflag [#allocation4], %s723
          %s725 = sand.u32 %s202, 1
          %s726 = smul.addr %s725, 32
          %s727 = scalar_lea.vmem [#allocation8], %s726
          %728 = dma.done %s724, 512
        $region72: #{tpu_custom_call.1} parent=67 // pred_fallthru
          _
      $region68: #{tpu_custom_call.1} parent=5 // pred_fallthru
        _
    $region6: #{tpu_custom_call.1} parent=1 // loop_footer
      %s24 = sadd.s32 1, %s20
    $region7: #{tpu_custom_call.1} parent=1 // loop_footer_branch
      %19 = sbr.rel target = $region3
    $region8: #{tpu_custom_call.1} parent=1 // loop_exit
      _
    %729 = vsyncpa [#allocation3], 1
    %s730 = scalar_lea.sflag [#allocation3], 1
    %731 = vsyncpa %s730, 1
    %732 = vsyncpa [#allocation6], 1
    %733 = vsyncpa [#allocation4], 1
    %s734 = scalar_lea.sflag [#allocation4], 1
    %735 = vsyncpa %s734, 1

</llo_original>
